<compile_context>
chip_gen: v6e
topology: v6e:2x2x1
jax: 0.10.0
libtpu: 0.0.40
codegen_flags: <defaults>
</compile_context>

<pallas_src>
import math

import jax
import jax.numpy as jnp
from jax.experimental import pallas as pl
from jax.experimental.pallas import tpu as pltpu


def _vmem_limit():
    try:
        cap = pltpu.get_tpu_info().vmem_capacity_bytes
        return max(32 * 1024 * 1024, min(int(cap * 3 // 4), 112 * 1024 * 1024))
    except Exception:
        return 48 * 1024 * 1024


_VMEM_LIMIT = _vmem_limit()


# ----------------------------------------------------------------------------------
# Tiling helpers
# ----------------------------------------------------------------------------------

def _tile(dim, quantum, cap):
    """Tile size <= cap: the full dim when it fits (always legal), otherwise the
    largest quantum-aligned tile <= cap (edge blocks are masked via pl.cdiv grids)."""
    if dim <= cap:
        return dim
    return max(quantum, cap - cap % quantum)


def _graph_rows(O, T, V, S, budget_bytes=6 << 20):
    """Rows (= Ot*T) per graph-kernel step: largest Ot | O with sublane-aligned
    Ot*T whose per-step xd slab stays under ~6 MiB bf16; falls back to full O."""
    best = None
    for ot in range(1, O + 1):
        if O % ot:
            continue
        if (ot * T) % 8 != 0 and ot != O:
            continue
        if S * ot * T * V * 2 <= budget_bytes:
            best = ot
    if best is None:
        best = O
    return best * T


# ----------------------------------------------------------------------------------
# Pallas kernels
# ----------------------------------------------------------------------------------

def pl_conv1x1(xm, W, b):
    """Per-sample 1x1 conv: (N, C, L) x (R, C) -> (N, R, L) bf16, bias per out row.

    Grid = (N, L-tiles, R-tiles) with R innermost so each x tile is fetched once and
    only the small weight tile is re-streamed; edge tiles are masked (pl.cdiv)."""
    N, C, L = xm.shape
    R = W.shape[0]
    Rt = _tile(R, 16, 256)
    Lt = _tile(L, 128, 1024)

    def kern(w_ref, b_ref, x_ref, o_ref):
        acc = jnp.dot(w_ref[...], x_ref[0], preferred_element_type=jnp.float32)
        o_ref[0] = (acc + b_ref[...]).astype(o_ref.dtype)

    return pl.pallas_call(
        kern,
        grid=(N, pl.cdiv(L, Lt), pl.cdiv(R, Rt)),
        in_specs=[pl.BlockSpec((Rt, C), lambda n, l, r: (r, 0)),
                  pl.BlockSpec((Rt, 1), lambda n, l, r: (r, 0)),
                  pl.BlockSpec((1, C, Lt), lambda n, l, r: (n, 0, l))],
        out_specs=pl.BlockSpec((1, Rt, Lt), lambda n, l, r: (n, r, l)),
        out_shape=jax.ShapeDtypeStruct((N, R, L), jnp.bfloat16),
        compiler_params=pltpu.CompilerParams(
            dimension_semantics=("parallel", "parallel", "parallel"),
            vmem_limit_bytes=_VMEM_LIMIT),
    )(W.astype(jnp.bfloat16), b.reshape(R, 1).astype(jnp.float32),
      xm.astype(jnp.bfloat16))


def pl_adaptive_adj(a, b, A, alpha):
    """Aadp[n,i] = A[i] + tanh(A1 @ A2 / d) * alpha for all subsets of one sample.

    a, b: (N, S, ic*T, V) bf16 (natural NCHW flattening; the permuted A1 @ A2 of the
    reference is a_flat^T @ b_flat).  bf16 goes straight to the MXU, f32 accumulate;
    the subset loop is unrolled in-kernel (one grid step per sample)."""
    N, S, KT, V = a.shape
    inv_d = 1.0 / KT

    def kern(a_ref, b_ref, A_ref, al_ref, o_ref):
        al = al_ref[0, 0]
        for i in range(S):
            s = jax.lax.dot_general(a_ref[0, i], b_ref[0, i],
                                    dimension_numbers=(((0,), (0,)), ((), ())),
                                    preferred_element_type=jnp.float32)
            o_ref[0, i] = A_ref[i] + jnp.tanh(s * inv_d) * al

    return pl.pallas_call(
        kern,
        grid=(N,),
        in_specs=[pl.BlockSpec((1, S, KT, V), lambda n: (n, 0, 0, 0)),
                  pl.BlockSpec((1, S, KT, V), lambda n: (n, 0, 0, 0)),
                  pl.BlockSpec((S, V, V), lambda n: (0, 0, 0)),
                  pl.BlockSpec((1, 1), lambda n: (0, 0))],
        out_specs=pl.BlockSpec((1, S, V, V), lambda n: (n, 0, 0, 0)),
        out_shape=jax.ShapeDtypeStruct((N, S, V, V), jnp.float32),
        compiler_params=pltpu.CompilerParams(
            dimension_semantics=("parallel",),
            vmem_limit_bytes=_VMEM_LIMIT),
    )(a, b, A.astype(jnp.float32), jnp.asarray(alpha, jnp.float32).reshape(1, 1))


def pl_graph_res_relu(xd, adj, res, rows):
    """y[n] = relu( sum_i xd[n,i] @ adj[n,i] + res[n] ).

    BN scale is already folded into xd's producing weights and the BN shift (plus
    conv_d biases) is folded into res, so the epilogue is just add + relu.  Subsets
    are unrolled as a value chain (no scratch RMW); O is chunked via `rows`."""
    N, S, OT, V = xd.shape
    assert OT % rows == 0

    def kern(xd_ref, adj_ref, res_ref, o_ref):
        acc = jnp.dot(xd_ref[0, 0], adj_ref[0, 0],
                      preferred_element_type=jnp.float32)
        for i in range(1, S):
            acc = acc + jnp.dot(xd_ref[0, i], adj_ref[0, i],
                                preferred_element_type=jnp.float32)
        v = acc + res_ref[0].astype(jnp.float32)
        o_ref[0] = jnp.maximum(v, 0.0).astype(o_ref.dtype)

    return pl.pallas_call(
        kern,
        grid=(N, OT // rows),
        in_specs=[pl.BlockSpec((1, S, rows, V), lambda n, c: (n, 0, c, 0)),
                  pl.BlockSpec((1, S, V, V), lambda n, c: (n, 0, 0, 0)),
                  pl.BlockSpec((1, rows, V), lambda n, c: (n, c, 0))],
        out_specs=pl.BlockSpec((1, rows, V), lambda n, c: (n, c, 0)),
        out_shape=jax.ShapeDtypeStruct((N, OT, V), jnp.bfloat16),
        compiler_params=pltpu.CompilerParams(
            dimension_semantics=("parallel", "parallel"),
            vmem_limit_bytes=_VMEM_LIMIT),
    )(xd, adj.astype(jnp.bfloat16), res.astype(jnp.bfloat16))


def pl_tcn(y4, gates, Wt, bt, stride, res):
    """unit_tcn (kernel (9,1), pad (4,0), stride (s,1), BN folded) fused with the
    three attention gates of unit_aagcn, the block residual and the final ReLU.

    y4:   (N, C, T, V) bf16 gcn output BEFORE attention gating.
    gates:(w_c (N,C), w_t (N,T), w_v (N,V)) multiplicative gates (1 + sigmoid).
    Wt:   (K, O, C) bf16 (BN folded), bt: (O,) f32.
    res:  (N, O, T_out*V) bf16 block residual, or None (residual=False block).

    The padded input is split into `stride` temporal phases (lane-dense (C, F*V)).
    The gates are applied ONCE per phase into a bf16 VMEM scratch; the 9 taps then
    slice bf16 and accumulate MXU matmuls as a value chain (no im2col, no RMW)."""
    N, C, T, V = y4.shape
    K, O, _ = Wt.shape
    pad = (K - 1) // 2
    T_out = (T - 1) // stride + 1
    L = T_out * V
    w_c, w_t, w_v = gates

    yp = jnp.pad(y4, ((0, 0), (0, 0), (pad, pad), (0, 0)))
    wt_pad = jnp.pad(w_t, ((0, 0), (pad, pad)), constant_values=1.0)

    phases, gtvs = [], []
    for p in range(stride):
        need = max(k // stride for k in range(K) if k % stride == p) + T_out
        ph = yp[:, :, p::stride, :]
        gt = wt_pad[:, p::stride]
        Fp = ph.shape[2]
        if Fp < need:
            ph = jnp.pad(ph, ((0, 0), (0, 0), (0, need - Fp), (0, 0)))
            gt = jnp.pad(gt, ((0, 0), (0, need - Fp)), constant_values=1.0)
        else:
            ph = ph[:, :, :need, :]
            gt = gt[:, :need]
        phases.append(ph.reshape(N, C, need * V).astype(jnp.bfloat16))
        gtvs.append((gt[:, :, None] * w_v[:, None, :])
                    .reshape(N, 1, need * V).astype(jnp.bfloat16))
    gc = w_c.reshape(N, C, 1).astype(jnp.bfloat16)

    has_res = res is not None
    n_ph = stride
    n_in = 3 + 2 * n_ph + (1 if has_res else 0)

    def kern(*refs):
        w_ref, b_ref, gc_ref = refs[0], refs[1], refs[2]
        xph = refs[3:3 + n_ph]
        gtv = refs[3 + n_ph:3 + 2 * n_ph]
        res_ref = refs[3 + 2 * n_ph] if has_res else None
        o_ref = refs[n_in]
        gbuf = refs[n_in + 1:]

        # Apply channel/frame/joint gates once per phase (not once per tap).
        gcv = gc_ref[0]                                         # (C, 1) bf16
        for p in range(n_ph):
            gbuf[p][...] = xph[p][0] * gcv * gtv[p][0]

        # 9-tap temporal conv as a value chain of MXU matmuls (f32 accumulate).
        acc = None
        for k in range(K):
            p = k % stride
            off = (k // stride) * V
            xg = gbuf[p][:, pl.ds(off, L)]                      # (C, L) bf16
            d = jnp.dot(w_ref[k], xg, preferred_element_type=jnp.float32)
            acc = d if acc is None else acc + d
        v = acc + b_ref[...]
        if has_res:
            v = v + res_ref[0].astype(jnp.float32)
        o_ref[0] = jnp.maximum(v, 0.0).astype(o_ref.dtype)

    in_specs = [pl.BlockSpec((K, O, C), lambda n: (0, 0, 0)),
                pl.BlockSpec((O, 1), lambda n: (0, 0)),
                pl.BlockSpec((1, C, 1), lambda n: (n, 0, 0))]
    args = [Wt.astype(jnp.bfloat16), bt.reshape(O, 1).astype(jnp.float32), gc]
    for p in range(n_ph):
        FpV = phases[p].shape[2]
        in_specs.append(pl.BlockSpec((1, C, FpV), lambda n: (n, 0, 0)))
        args.append(phases[p])
    for p in range(n_ph):
        FpV = gtvs[p].shape[2]
        in_specs.append(pl.BlockSpec((1, 1, FpV), lambda n: (n, 0, 0)))
        args.append(gtvs[p])
    if has_res:
        in_specs.append(pl.BlockSpec((1, O, L), lambda n: (n, 0, 0)))
        args.append(res.astype(jnp.bfloat16))

    scratch = [pltpu.VMEM((C, phases[p].shape[2]), jnp.bfloat16)
               for p in range(n_ph)]

    out = pl.pallas_call(
        kern,
        grid=(N,),
        in_specs=in_specs,
        out_specs=pl.BlockSpec((1, O, L), lambda n: (n, 0, 0)),
        out_shape=jax.ShapeDtypeStruct((N, O, L), jnp.bfloat16),
        scratch_shapes=scratch,
        compiler_params=pltpu.CompilerParams(
            dimension_semantics=("parallel",),
            vmem_limit_bytes=_VMEM_LIMIT),
    )(*args)
    return out.reshape(N, O, T_out, V)


# ----------------------------------------------------------------------------------
# BatchNorm (inference) helpers
# ----------------------------------------------------------------------------------

def bn_scale_shift(bn, eps=1e-5):
    gamma, beta, mean, var = bn
    s = gamma / jnp.sqrt(var + eps)
    return s, beta - mean * s


def fold_bn(W, b, bn, eps=1e-5):
    gamma, beta, mean, var = bn
    s = gamma / jnp.sqrt(var + eps)
    Wf = W * s.reshape((-1,) + (1,) * (W.ndim - 1))
    bf = (b - mean) * s + beta
    return Wf, bf


def _conv1d_1out(se, W, b):
    """nn.Conv1d(Cc, 1, K, padding=(K-1)//2) on se = (N, Cc, Ls) f32 -> (N, Ls)."""
    K = W.shape[2]
    pad = (K - 1) // 2
    out = jax.lax.conv_general_dilated(
        se, W.astype(jnp.float32), window_strides=(1,), padding=[(pad, pad)],
        dimension_numbers=('NCH', 'OIH', 'NCH'))
    return out[:, 0, :] + b[0]


# ----------------------------------------------------------------------------------
# Module forwards
# ----------------------------------------------------------------------------------

def unit_aagcn_forward(x, gp):
    """unit_aagcn (adaptive=True, attention=True), x: (N, C, T, V) bf16.
    Returns (y_before_gating (N,O,T,V) bf16, (w_c, w_t, w_v)); the gates are applied
    downstream inside the fused tcn kernel (same math as the reference)."""
    N, C, T, V = x.shape
    S = gp['A'].shape[0]
    ic = gp['inter_c']
    O = gp['out_c']
    xm = x.reshape(N, C, T * V)

    # Fused conv_a | conv_b | conv_d (all subsets, BN scale folded into conv_d rows).
    proj = pl_conv1x1(xm, gp['W_cat'], gp['b_cat'])                  # (N, R, T*V)
    a = proj[:, :S * ic, :].reshape(N, S, ic * T, V)
    b = proj[:, S * ic:2 * S * ic, :].reshape(N, S, ic * T, V)
    xd = proj[:, 2 * S * ic:, :].reshape(N, S, O * T, V)

    adj = pl_adaptive_adj(a, b, gp['A'], gp['alpha'])                # (N, S, V, V)

    # Residual of unit_aagcn: the gcn BN shift (incl. conv_d biases) is folded in.
    if gp['down_W'] is not None:
        res = pl_conv1x1(xm, gp['down_W'], gp['down_b']).reshape(N, O * T, V)
    else:
        shift_rt = jnp.repeat(gp['shift'], T)                        # (O*T,)
        res = (x.reshape(N, O * T, V).astype(jnp.float32)
               + shift_rt[None, :, None]).astype(jnp.bfloat16)

    rows = _graph_rows(O, T, V, S)
    y = pl_graph_res_relu(xd, adj, res, rows)                        # (N, O*T, V)
    y4 = y.reshape(N, O, T, V)

    # Attention gates: pooled statistics + 1-output heads stay in XLA (the matmuls
    # have a single output lane, so the MXU would be idle; see perf review).
    # TODO(synk): the mean-over-T pooling could be fused as a second output of the
    # graph kernel epilogue to save one HBM pass over y4.
    y4f = y4.astype(jnp.float32)
    se = jnp.mean(y4f, axis=2)                                       # (N, O, V)
    w_v = 1.0 + jax.nn.sigmoid(_conv1d_1out(se, gp['conv_sa_w'], gp['conv_sa_b']))
    se = jnp.einsum('nctv,nv->nct', y4f, w_v) / V                    # (N, O, T)
    w_t = 1.0 + jax.nn.sigmoid(_conv1d_1out(se, gp['conv_ta_w'], gp['conv_ta_b']))
    se = jnp.einsum('nctv,nt,nv->nc', y4f, w_t, w_v) / (T * V)       # (N, O)
    h = jax.nn.relu(se @ gp['fc1c_w'].T + gp['fc1c_b'])
    w_c = 1.0 + jax.nn.sigmoid(h @ gp['fc2c_w'].T + gp['fc2c_b'])
    return y4, (w_c, w_t, w_v)


def aagcn_block_forward(x, blk):
    """AAGCNBlock: relu(tcn(gcn(x)) + residual(x)); the attention gating of gcn(x)
    and the block residual/ReLU are fused into the tcn kernel."""
    N, C, T, V = x.shape
    y4, gates = unit_aagcn_forward(x, blk['gcn'])
    stride = blk['stride']
    T_out = (T - 1) // stride + 1
    if blk['residual'] == 'zero':
        res = None
    elif blk['residual'] == 'identity':
        res = x.reshape(N, C, T * V)
    else:  # unit_tcn(kernel=1, stride) residual, BN folded
        xs = x[:, :, ::stride, :][:, :, :T_out, :]
        res = pl_conv1x1(xs.reshape(N, C, T_out * V), blk['res_w'], blk['res_b'])
    return pl_tcn(y4, gates, blk['tcn_w'], blk['tcn_b'], stride, res)


def aagcn_forward(x, params):
    """AAGCN.forward. x: (N, M, T, V, C) f32."""
    N, M, T, V, C = x.shape
    xp = jnp.transpose(x, (0, 1, 3, 4, 2)).reshape(N, M * V * C, T)
    s, sh = bn_scale_shift(params['data_bn'])        # data_bn ('MVC'), eval mode
    xp = xp * s[None, :, None] + sh[None, :, None]
    xb = xp.reshape(N, M, V, C, T)
    xb = jnp.transpose(xb, (0, 1, 3, 4, 2)).reshape(N * M, C, T, V)
    xb = xb.astype(jnp.bfloat16)
    for blk in params['blocks']:
        xb = aagcn_block_forward(xb, blk)
    return xb.reshape((N, M) + xb.shape[1:]).astype(jnp.float32)


# ----------------------------------------------------------------------------------
# Deterministic parameter initialization (fused / BN-folded parameterization)
# ----------------------------------------------------------------------------------

def init_aagcn_params(key, A, in_channels, base_channels, num_person,
                      num_stages, inflate_stages, down_stages):
    V = A.shape[-1]
    S = A.shape[0]
    kit = iter(jax.random.split(key, 4096))
    nk = lambda: next(kit)

    def w2(o, i):
        return jax.random.normal(nk(), (o, i), jnp.float32) / math.sqrt(i)

    def w3(o, i, k):
        return jax.random.normal(nk(), (o, i, k), jnp.float32) / math.sqrt(i * k)

    def bvec(o):
        return 0.01 * jax.random.normal(nk(), (o,), jnp.float32)

    def bn(c):
        return (1.0 + 0.1 * jax.random.normal(nk(), (c,), jnp.float32),   # gamma
                0.1 * jax.random.normal(nk(), (c,), jnp.float32),         # beta
                0.1 * jax.random.normal(nk(), (c,), jnp.float32),         # running mean
                0.5 + jax.random.uniform(nk(), (c,), jnp.float32))        # running var

    params = {'data_bn': bn(num_person * in_channels * V), 'blocks': []}

    # Replicate AAGCN.__init__ stage construction.
    stage_cfg = []
    if in_channels != base_channels:
        stage_cfg.append((in_channels, base_channels, 1, 'zero'))      # residual=False
    bc = base_channels
    for i in range(2, num_stages + 1):
        oc = bc * (1 + (i in inflate_stages))
        stride = 1 + (i in down_stages)
        resk = 'identity' if (bc == oc and stride == 1) else 'conv'
        stage_cfg.append((bc, oc, stride, resk))
        bc = oc

    kj = V if V % 2 else V - 1
    for (ci, oc, stride, resk) in stage_cfg:
        inter_c = oc // 4
        Wa = [w2(inter_c, ci) for _ in range(S)]
        ba = [bvec(inter_c) for _ in range(S)]
        Wb = [w2(inter_c, ci) for _ in range(S)]
        bb = [bvec(inter_c) for _ in range(S)]
        Wd = [w2(oc, ci) for _ in range(S)]
        bd = [bvec(oc) for _ in range(S)]
        bn_g = bn(oc)
        s_bn, t_bn = bn_scale_shift(bn_g)
        # BN scale folded into the conv_d rows (per-out-channel scale commutes with
        # the graph matmul); conv_d biases don't commute with @A, so they (and the BN
        # shift) are folded into the residual operand instead.
        Wd_scaled = [w * s_bn[:, None] for w in Wd]
        W_cat = jnp.concatenate(Wa + Wb + Wd_scaled, axis=0).astype(jnp.bfloat16)
        b_cat = jnp.concatenate(ba + bb + [jnp.zeros((oc,), jnp.float32)] * S, axis=0)
        shift_total = sum(bd) * s_bn + t_bn
        gcn = {
            'A': jnp.asarray(A, jnp.float32),
            'alpha': jnp.zeros((), jnp.float32),                       # as in __init__
            'inter_c': inter_c, 'out_c': oc,
            'W_cat': W_cat, 'b_cat': b_cat,
            'conv_sa_w': w3(1, oc, kj), 'conv_sa_b': bvec(1),
            'conv_ta_w': w3(1, oc, 9), 'conv_ta_b': bvec(1),
            'fc1c_w': w2(oc // 2, oc), 'fc1c_b': bvec(oc // 2),
            'fc2c_w': w2(oc, oc // 2), 'fc2c_b': bvec(oc),
        }
        if ci != oc:
            dw, db = fold_bn(w2(oc, ci), bvec(oc), bn(oc))
            gcn['down_W'] = dw.astype(jnp.bfloat16)
            gcn['down_b'] = db + shift_total                           # shift folded
            gcn['shift'] = None
        else:
            gcn['down_W'], gcn['down_b'] = None, None
            gcn['shift'] = shift_total                                 # host-folds into res

        tw, tb = fold_bn(w3(oc, oc, 9), bvec(oc), bn(oc))
        blk = {'gcn': gcn,
               'tcn_w': jnp.transpose(tw, (2, 0, 1)).astype(jnp.bfloat16),  # (K, O, C)
               'tcn_b': tb,
               'stride': stride, 'residual': resk}
        if resk == 'conv':
            rw, rb = fold_bn(w3(oc, ci, 1), bvec(oc), bn(oc))
            blk['res_w'] = rw[:, :, 0].astype(jnp.bfloat16)
            blk['res_b'] = rb
        params['blocks'].append(blk)
    return params


# ----------------------------------------------------------------------------------

if __name__ == "__main__":
    key = jax.random.PRNGKey(0)
    kx, kp = jax.random.split(key)

    # Small, module-consistent shapes: N=2 clips, M=2 persons, T=8 frames,
    # V=8 joints, C=3 input channels; 3 graph subsets; 3 stages, inflate/down at 3.
    N, M, T, V, C = 2, 2, 8, 8, 3
    x = jax.random.normal(kx, (N, M, T, V, C), jnp.float32)

    # Deterministic adjacency A (num_subset=3, V, V): identity, chain, chain^T.
    I = jnp.eye(V, dtype=jnp.float32)
    chain = jnp.zeros((V, V), jnp.float32).at[jnp.arange(V - 1), jnp.arange(1, V)].set(1.0)
    A = jnp.stack([I, chain, chain.T], axis=0)

    params = init_aagcn_params(kp, A, in_channels=C, base_channels=8,
                               num_person=M, num_stages=3,
                               inflate_stages=(3,), down_stages=(3,))

    out = aagcn_forward(x, params)
    jax.block_until_ready(out)
    assert out.shape == (N, M, 16, 4, V), out.shape
    assert bool(jnp.all(jnp.isfinite(out)))
    print("KERNEL_OK")
</pallas_src>

<mosaic_0001>
module attributes {stable_mosaic.version = 11 : i64} {
  func.func @kern(%arg0: i32, %arg1: i32, %arg2: i32, %arg3: memref<36x3xbf16, #tpu.memory_space<vmem>>, %arg4: memref<36x1xf32, #tpu.memory_space<vmem>>, %arg5: memref<1x3x64xbf16, #tpu.memory_space<vmem>>, %arg6: memref<1x36x64xbf16, #tpu.memory_space<vmem>>) attributes {dimension_semantics = [#tpu.dimension_semantics<parallel>, #tpu.dimension_semantics<parallel>, #tpu.dimension_semantics<parallel>], iteration_bounds = array<i64: 4, 1, 1>, scalar_prefetch = 0 : i64, scratch_operands = 0 : i64, tpu.core_type = #tpu.core_type<tc>, window_params = [{transform_indices = @transform_0, window_bounds = array<i64: 36, 3>}, {transform_indices = @transform_1, window_bounds = array<i64: 36, 1>}, {transform_indices = @transform_2, window_bounds = array<i64: 1, 3, 64>}, {transform_indices = @transform_3, window_bounds = array<i64: 1, 36, 64>}]} {
    %c0 = arith.constant 0 : index
    %c0_0 = arith.constant 0 : index
    %0 = vector.load %arg3[%c0, %c0_0] : memref<36x3xbf16, #tpu.memory_space<vmem>>, vector<36x3xbf16>
    %c0_1 = arith.constant 0 : index
    %c0_2 = arith.constant 0 : index
    %c0_3 = arith.constant 0 : index
    %1 = vector.load %arg5[%c0_1, %c0_2, %c0_3] : memref<1x3x64xbf16, #tpu.memory_space<vmem>>, vector<1x3x64xbf16>
    %2 = vector.shape_cast %1 : vector<1x3x64xbf16> to vector<3x64xbf16>
    %cst = arith.constant dense<0.000000e+00> : vector<36x64xf32>
    %3 = tpu.matmul %0, %2, %cst {dimension_numbers = #tpu.dot_dimension_numbers<[1], [0], [0], [1], [0, 0, 1, 1], [], []>} : vector<36x3xbf16>, vector<3x64xbf16>, vector<36x64xf32> -> vector<36x64xf32>
    %c0_4 = arith.constant 0 : index
    %c0_5 = arith.constant 0 : index
    %4 = vector.load %arg4[%c0_4, %c0_5] : memref<36x1xf32, #tpu.memory_space<vmem>>, vector<36x1xf32>
    %5 = vector.broadcast %4 : vector<36x1xf32> to vector<36x64xf32>
    %6 = arith.addf %3, %5 : vector<36x64xf32>
    %7 = arith.truncf %6 : vector<36x64xf32> to vector<36x64xbf16>
    %c0_6 = arith.constant 0 : index
    %c0_7 = arith.constant 0 : index
    %c0_8 = arith.constant 0 : index
    %8 = vector.load %arg6[%c0_6, %c0_7, %c0_8] : memref<1x36x64xbf16, #tpu.memory_space<vmem>>, vector<1x36x64xbf16>
    %9 = vector.shape_cast %8 : vector<1x36x64xbf16> to vector<36x64xbf16>
    %10 = vector.shape_cast %7 : vector<36x64xbf16> to vector<1x36x64xbf16>
    tpu.vector_store %arg6[%c0_6, %c0_7, %c0_8], %10 {strides = array<i32>} : memref<1x36x64xbf16, #tpu.memory_space<vmem>>, vector<1x36x64xbf16>,
    return
  }
  func.func @transform_0(%arg0: i32, %arg1: i32, %arg2: i32) -> (i32, i32) {
    %c0_i32 = arith.constant 0 : i32
    %c0_i32_0 = arith.constant 0 : i32
    return %arg2, %c0_i32 : i32, i32
  }
  func.func @transform_1(%arg0: i32, %arg1: i32, %arg2: i32) -> (i32, i32) {
    %c0_i32 = arith.constant 0 : i32
    %c0_i32_0 = arith.constant 0 : i32
    return %arg2, %c0_i32 : i32, i32
  }
  func.func @transform_2(%arg0: i32, %arg1: i32, %arg2: i32) -> (i32, i32, i32) {
    %c0_i32 = arith.constant 0 : i32
    %c0_i32_0 = arith.constant 0 : i32
    return %arg0, %c0_i32, %arg1 : i32, i32, i32
  }
  func.func @transform_3(%arg0: i32, %arg1: i32, %arg2: i32) -> (i32, i32, i32) {
    %c0_i32 = arith.constant 0 : i32
    return %arg0, %arg2, %arg1 : i32, i32, i32
  }
}

</mosaic_0001>

<llo_original>
// kernel: tpu_custom_call.1
$region0: #{tpu_custom_call.1}
  #allocation0 [shape = 'u32[]', space=smem, size = 0x4, offset = 0x4, fixed_abs, tag = 'smem constant byte address 0x4 - core index']
  #allocation1 [shape = 'u32[144,128]{1,0:T(1,128)}', space=vmem, size = 0x12000, scoped, tag = 'internal scratch']
  %s0 = inlined_call_operand.vmem [shape: bf16[36,3], index: 0, kind: input, shape index: {}]
  %s1 = inlined_call_operand.vmem [shape: f32[36,1], index: 1, kind: input, shape index: {}]
  %s2 = inlined_call_operand.vmem [shape: bf16[4,3,64], index: 2, kind: input, shape index: {}]
  %s3 = inlined_call_operand.vmem [shape: bf16[4,36,64], index: 3, kind: output, shape index: {}]
  %s4 = sld [smem:[#allocation0]]
  $region45: #{tpu_custom_call.1} parent=0
    _
  %s6 = ssub.s32 1, %s4
  %s7 = scalar_select 0, %s6, %s4
  loop: start=0, step=1, limit=6
  $region2: #{tpu_custom_call.1} parent=0 // loop_pre_header
    _
  $region3: #{tpu_custom_call.1} parent=0 // loop_header
    %s9 = sphi 0, %s13
    %p10 = scmp.ge.s32.totalorder %s9, 6
    %s16 = sphi 0, %s35
    %s17 = sphi 0, %s31
    %s18 = sphi 0, %s27
    %s19 = sphi 0, %s16
    %s20 = sphi 0, %s17
    %s21 = sphi 0, %s18
    %s22 = sphi 0, %s19
    %s23 = sphi 0, %s20
    %s24 = sphi 0, %s21
    %s38 = sphi 0, %s40
    %s41 = sphi 0, %s38
    %s42 = sphi 0, %s41
    %s58 = sphi 0, %s42
    %s64 = sphi 0, %s66
    %s67 = sphi 0, %s64
    %s68 = sphi 0, %s67
    %s84 = sphi 0, %s68
    %s92 = sphi 0, %s94
    %s95 = sphi 0, %s92
    %s96 = sphi 0, %s95
    %s112 = sphi 0, %s96
    %s122 = sphi 0, %s124
    %s125 = sphi 0, %s122
    %s126 = sphi 0, %s125
    %s142 = sphi 0, %s126
  $region4: #{tpu_custom_call.1} parent=0 // loop_header_branch
    %12 = sbr.rel (%p10) target = $region8
  $region5: #{tpu_custom_call.1} parent=0 // loop_body
    %s14 = ssub.s32 %s9, 1
    %s15 = ssub.s32 %s9, 2
    %s25 = sadd.s32 1, %s18
    %p26 = scmp.ge.s32.totalorder %s25, 1
    %s27 = scalar_select %p26, 0, %s25
    %s28 = sadd.s32 1, %s17
    %s29 = scalar_select %p26, %s28, %s17
    %p30 = scmp.ge.s32.totalorder %s29, 1
    %s31 = scalar_select %p30, 0, %s29
    %s32 = sadd.s32 1, %s16
    %s33 = scalar_select %p30, %s32, %s16
    %p34 = scmp.ge.s32.totalorder %s33, 4
    %s35 = scalar_select %p34, 0, %s33
    %s36 = ssub.s32 %s18, %s27
    %p37 = scmp.eq.s32.totalorder %s36, 0
    %s39 = sadd.s32 %s38, 1
    %s40 = scalar_select %p37, %s38, %s39
    %p43 = pneg %p37
    %p44 = scmp.eq.s32.totalorder %s9, 3
    %p45 = por %p43, %p44
    %p46 = scmp.ne.s32.totalorder %s38, %s41
    %p47 = scmp.eq.s32.totalorder %s9, 0
    %p48 = por %p46, %p47
    %p49 = scmp.ne.s32.totalorder %s38, %s41
    %p50 = scmp.eq.s32.totalorder %s14, 3
    %p51 = por %p49, %p50
    %p52 = scmp.ne.s32.totalorder %s41, %s42
    %p53 = scmp.eq.s32.totalorder %s14, 0
    %p54 = por %p52, %p53
    %p55 = scmp.ne.s32.totalorder %s41, %s42
    %p56 = scmp.eq.s32.totalorder %s15, 3
    %p57 = por %p55, %p56
    %p59 = scmp.ne.s32.totalorder %s42, %s58
    %p60 = scmp.eq.s32.totalorder %s15, 0
    %p61 = por %p59, %p60
    %s62 = ssub.s32 %s18, %s27
    %p63 = scmp.eq.s32.totalorder %s62, 0
    %s65 = sadd.s32 %s64, 1
    %s66 = scalar_select %p63, %s64, %s65
    %p69 = pneg %p63
    %p70 = scmp.eq.s32.totalorder %s9, 3
    %p71 = por %p69, %p70
    %p72 = scmp.ne.s32.totalorder %s64, %s67
    %p73 = scmp.eq.s32.totalorder %s9, 0
    %p74 = por %p72, %p73
    %p75 = scmp.ne.s32.totalorder %s64, %s67
    %p76 = scmp.eq.s32.totalorder %s14, 3
    %p77 = por %p75, %p76
    %p78 = scmp.ne.s32.totalorder %s67, %s68
    %p79 = scmp.eq.s32.totalorder %s14, 0
    %p80 = por %p78, %p79
    %p81 = scmp.ne.s32.totalorder %s67, %s68
    %p82 = scmp.eq.s32.totalorder %s15, 3
    %p83 = por %p81, %p82
    %p85 = scmp.ne.s32.totalorder %s68, %s84
    %p86 = scmp.eq.s32.totalorder %s15, 0
    %p87 = por %p85, %p86
    %s88 = ssub.s32 %s16, %s35
    %s89 = ssub.s32 %s17, %s31
    %s90 = sor.u32 %s88, %s89
    %p91 = scmp.eq.s32.totalorder %s90, 0
    %s93 = sadd.s32 %s92, 1
    %s94 = scalar_select %p91, %s92, %s93
    %p97 = pneg %p91
    %p98 = scmp.eq.s32.totalorder %s9, 3
    %p99 = por %p97, %p98
    %p100 = scmp.ne.s32.totalorder %s92, %s95
    %p101 = scmp.eq.s32.totalorder %s9, 0
    %p102 = por %p100, %p101
    %p103 = scmp.ne.s32.totalorder %s92, %s95
    %p104 = scmp.eq.s32.totalorder %s14, 3
    %p105 = por %p103, %p104
    %p106 = scmp.ne.s32.totalorder %s95, %s96
    %p107 = scmp.eq.s32.totalorder %s14, 0
    %p108 = por %p106, %p107
    %p109 = scmp.ne.s32.totalorder %s95, %s96
    %p110 = scmp.eq.s32.totalorder %s15, 3
    %p111 = por %p109, %p110
    %p113 = scmp.ne.s32.totalorder %s96, %s112
    %p114 = scmp.eq.s32.totalorder %s15, 0
    %p115 = por %p113, %p114
    %s116 = ssub.s32 %s16, %s35
    %s117 = ssub.s32 %s18, %s27
    %s118 = sor.u32 %s116, %s117
    %s119 = ssub.s32 %s17, %s31
    %s120 = sor.u32 %s118, %s119
    %p121 = scmp.eq.s32.totalorder %s120, 0
    %s123 = sadd.s32 %s122, 1
    %s124 = scalar_select %p121, %s122, %s123
    %p127 = pneg %p121
    %p128 = scmp.eq.s32.totalorder %s9, 3
    %p129 = por %p127, %p128
    %p130 = scmp.ne.s32.totalorder %s122, %s125
    %p131 = scmp.eq.s32.totalorder %s9, 0
    %p132 = por %p130, %p131
    %p133 = scmp.ne.s32.totalorder %s122, %s125
    %p134 = scmp.eq.s32.totalorder %s14, 3
    %p135 = por %p133, %p134
    %p136 = scmp.ne.s32.totalorder %s125, %s126
    %p137 = scmp.eq.s32.totalorder %s14, 0
    %p138 = por %p136, %p137
    %p139 = scmp.ne.s32.totalorder %s125, %s126
    %p140 = scmp.eq.s32.totalorder %s15, 3
    %p141 = por %p139, %p140
    %p143 = scmp.ne.s32.totalorder %s126, %s142
    %p144 = scmp.eq.s32.totalorder %s15, 0
    %p145 = por %p143, %p144
    %p146 = scmp.le.s32.totalorder 1, %s9
    %p147 = scmp.lt.s32.totalorder %s9, 5
    %p148 = pnand %p146, %p147
    %p149 = pneg %p148
    // Predicated region
    $region9: #{tpu_custom_call.1} parent=5 // pred_check
      _
    $region10: #{tpu_custom_call.1} parent=5 // pred_check_branch
      %151 = sbr.rel (%p148) target = $region12
    $region11: #{tpu_custom_call.1} parent=5 // pred_region
      %s152 = ssub.s32 %s9, 1
      // Predicated region
      $region13: #{tpu_custom_call.1} parent=11 // pred_check
        %p153 = pneg %p54
      $region14: #{tpu_custom_call.1} parent=11 // pred_check_branch
        %155 = sbr.rel (%p153) target = $region16
      $region15: #{tpu_custom_call.1} parent=11 // pred_region
        %s156 = smul.u32 5, %s21
        %p157 = scmp.lt.s32.totalorder %s156, 4
        %s158 = scalar_select %p157, %s156, 4
        %s159 = smul.addr %s158, 4
        %s160 = scalar_lea.vmem %s0, %s159
        %s161 = smul.u32 5, %s21
      $region16: #{tpu_custom_call.1} parent=11 // pred_fallthru
        _
      // Predicated region
      $region17: #{tpu_custom_call.1} parent=11 // pred_check
        %p162 = pneg %p80
      $region18: #{tpu_custom_call.1} parent=11 // pred_check_branch
        %164 = sbr.rel (%p162) target = $region20
      $region19: #{tpu_custom_call.1} parent=11 // pred_region
        %s165 = smul.u32 5, %s21
        %p166 = scmp.lt.s32.totalorder %s165, 4
        %s167 = scalar_select %p166, %s165, 4
        %s168 = smul.addr %s167, 8
        %s169 = scalar_lea.vmem %s1, %s168
        %s170 = smul.u32 5, %s21
      $region20: #{tpu_custom_call.1} parent=11 // pred_fallthru
        _
    $region12: #{tpu_custom_call.1} parent=5 // pred_fallthru
      _
    %p171 = scmp.lt.s32.totalorder %s9, 4
    // Predicated region
    $region21: #{tpu_custom_call.1} parent=5 // pred_check
      %p172 = pneg %p171
    $region22: #{tpu_custom_call.1} parent=5 // pred_check_branch
      %174 = sbr.rel (%p172) target = $region24
    $region23: #{tpu_custom_call.1} parent=5 // pred_region
      // Predicated region
      $region25: #{tpu_custom_call.1} parent=23 // pred_check
        %p175 = pneg %p102
      $region26: #{tpu_custom_call.1} parent=23 // pred_check_branch
        %177 = sbr.rel (%p175) target = $region28
      $region27: #{tpu_custom_call.1} parent=23 // pred_region
        %p178 = scmp.lt.s32.totalorder %s16, 3
        %s179 = scalar_select %p178, %s16, 3
        %p180 = scmp.lt.s32.totalorder %s17, 0
        %s181 = scalar_select %p180, %s17, 0
        %s182 = sadd.s32 %s181, %s179
        %s183 = smul.addr %s182, 2
        %s184 = scalar_lea.vmem %s2, %s183
      $region28: #{tpu_custom_call.1} parent=23 // pred_fallthru
        _
    $region24: #{tpu_custom_call.1} parent=5 // pred_fallthru
      _
    %p185 = scmp.le.s32.totalorder 1, %s9
    %p186 = scmp.lt.s32.totalorder %s9, 5
    %p187 = pnand %p185, %p186
    %p188 = pneg %p187
    // Predicated region
    $region29: #{tpu_custom_call.1} parent=5 // pred_check
      _
    $region30: #{tpu_custom_call.1} parent=5 // pred_check_branch
      %190 = sbr.rel (%p187) target = $region32
    $region31: #{tpu_custom_call.1} parent=5 // pred_region
      %s191 = ssub.s32 %s9, 1
      %s192 = smul.u32 5, %s21
      %p193 = scmp.lt.s32.totalorder %s192, 4
      %s194 = scalar_select %p193, %s192, 4
      %s195 = smul.addr %s194, 4
      %s196 = scalar_lea.vmem %s0, %s195
      %p197 = pneg %p54
      %p198 = pneg %p51
      %s199 = smul.u32 5, %s21
      %p200 = scmp.lt.s32.totalorder %s199, 4
      %s201 = scalar_select %p200, %s199, 4
      %s202 = smul.addr %s201, 8
      %s203 = scalar_lea.vmem %s1, %s202
      %p204 = pneg %p80
      %p205 = pneg %p77
      %p206 = scmp.lt.s32.totalorder %s19, 3
      %s207 = scalar_select %p206, %s19, 3
      %p208 = scmp.lt.s32.totalorder %s20, 0
      %s209 = scalar_select %p208, %s20, 0
      %s210 = sadd.s32 %s209, %s207
      %s211 = smul.addr %s210, 2
      %s212 = scalar_lea.vmem %s2, %s211
      %p213 = pneg %p108
      %p214 = pneg %p105
      %p215 = pneg %p138
      %p216 = pneg %p135
      %s217 = smul.u32 5, %s21
      %p218 = scmp.lt.s32.totalorder %s19, 3
      %s219 = scalar_select %p218, %s19, 3
      %p220 = scmp.lt.s32.totalorder %s217, 4
      %s221 = scalar_select %p220, %s217, 4
      %p222 = scmp.lt.s32.totalorder %s20, 0
      %s223 = scalar_select %p222, %s20, 0
      %s224 = sadd.s32 %s223, %s221
      %s225 = smul.addr %s219, 5
      %s226 = sadd.s32 %s224, %s225
      %s227 = smul.addr %s226, 4
      %s228 = scalar_lea.vmem %s3, %s227
      %s229 = smul.u32 5, %s21
      %p230 = scmp.lt.s32.totalorder %s229, 4
      %s231 = scalar_select %p230, %s229, 4
      %s232 = smul.addr %s231, 4
      %s233 = scalar_lea.vmem %s0, %s232
      %s234 = smul.u32 5, %s21
      %s235 = smul.u32 5, %s21
      %p236 = scmp.lt.s32.totalorder %s235, 4
      %s237 = scalar_select %p236, %s235, 4
      %s238 = smul.addr %s237, 8
      %s239 = scalar_lea.vmem %s1, %s238
      %s240 = smul.u32 5, %s21
      %p241 = scmp.lt.s32.totalorder %s19, 3
      %s242 = scalar_select %p241, %s19, 3
      %p243 = scmp.lt.s32.totalorder %s20, 0
      %s244 = scalar_select %p243, %s20, 0
      %s245 = sadd.s32 %s244, %s242
      %s246 = smul.addr %s245, 2
      %s247 = scalar_lea.vmem %s2, %s246
      %s248 = smul.u32 5, %s21
      %p249 = scmp.lt.s32.totalorder %s19, 3
      %s250 = scalar_select %p249, %s19, 3
      %p251 = scmp.lt.s32.totalorder %s248, 4
      %s252 = scalar_select %p251, %s248, 4
      %p253 = scmp.lt.s32.totalorder %s20, 0
      %s254 = scalar_select %p253, %s20, 0
      %s255 = sadd.s32 %s254, %s252
      %s256 = smul.addr %s250, 5
      %s257 = sadd.s32 %s255, %s256
      %s258 = smul.addr %s257, 4
      %s259 = scalar_lea.vmem %s3, %s258
      %s260 = smul.u32 5, %s21
      %v262 = vld [vmem:[%s233] sm:$0xf]
      %v263 = vld [vmem:[%s233 + $0x4] sm:$0xf]
      %v264 = vld [vmem:[%s233 + $0x8] sm:$0xf]
      %v265 = vld [vmem:[%s233 + $0xc] sm:$0xf]
      %v266 = vld [vmem:[%s233 + $0x10] sm:$0x3]
      %v267 = vld [vmem:[%s247] sm:$0x3]
      %v268 = vld [vmem:[%s239] sm:$0xff]
      %v269 = vld [vmem:[%s239 + $0x8] sm:$0xff]
      %v270 = vld [vmem:[%s239 + $0x10] sm:$0xff]
      %v271 = vld [vmem:[%s239 + $0x18] sm:$0xff]
      %v272 = vld [vmem:[%s239 + $0x20] sm:$0xf]
      %274 = vset.pattern.permute.xlu0 0
      %275 = vperm.xlu0 %274, %v268
      %v276 = vpop.permute.xlu0 %275
      %279 = vset.pattern.permute.xlu0 0
      %280 = vperm.xlu0 %279, %v269
      %v281 = vpop.permute.xlu0 %280
      %284 = vset.pattern.permute.xlu0 0
      %285 = vperm.xlu0 %284, %v270
      %v286 = vpop.permute.xlu0 %285
      %289 = vset.pattern.permute.xlu0 0
      %290 = vperm.xlu0 %289, %v271
      %v291 = vpop.permute.xlu0 %290
      %294 = vset.pattern.permute.xlu0 0
      %295 = vperm.xlu0 %294, %v272
      %v296 = vpop.permute.xlu0 %295
      %v303 = vunpack.c.l.b16 %v262
      %v304 = vunpack.c.l.b16 %v263
      %v305 = vunpack.c.l.b16 %v264
      %v306 = vunpack.c.l.b16 %v265
      %v307 = vunpack.c.l.b16 %v266
      %v308 = vpack.c.b16 %v304, %v303
      %v309 = vpack.c.b16 %v306, %v305
      %v310 = vpack.c.b16 %v307, %v307
      %vm311 = vcmask 23552
      %v313 = vsel %vm311, %v308, 0
      %v316 = vsel %vm311, %v309, 0
      %v319 = vsel %vm311, %v310, 0
      %vm321 = vcmask 1040384
      %vm322 = vcmask 1041408
      %v323 = vsel %vm321, 4294967295, 65535
      %v324 = vsel %vm322, %v323, 0
      %v326 = vand.u32 %v267, %v324
      %328 = vmatprep.subr.bf16.mxu0 0
      %329 = vmatpush1.bf16.msra.mxu0 0
      %330 = vmatprep.subr.bf16.mxu0 0
      %331 = vmatpush1.bf16.msra.mxu0 0
      %332 = vmatprep.subr.bf16.mxu0 0
      %333 = vmatpush1.bf16.msra.mxu0 0
      %334 = vmatprep.subr.bf16.mxu0 0
      %335 = vmatpush1.bf16.msra.mxu0 0
      %336 = vmatprep.subr.bf16.mxu0 0
      %337 = vmatpush1.bf16.msra.mxu0 0
      %338 = vmatprep.subr.bf16.mxu0 0
      %339 = vmatpush1.bf16.msra.mxu0 0
      %340 = vmatprep.subr.bf16.mxu0 0
      %341 = vmatpush1.bf16.msra.mxu0 0
      %342 = vmatprep.subr.bf16.mxu0 0
      %343 = vmatpush1.bf16.msra.mxu0 %v326
      %344 = vmatprep.subr.bf16.mxu0 0
      %345 = vmatpush2.bf16.msra.mxu0 0
      %346 = vmatprep.subr.bf16.mxu0 0
      %347 = vmatpush2.bf16.msra.mxu0 0
      %348 = vmatprep.subr.bf16.mxu0 0
      %349 = vmatpush2.bf16.msra.mxu0 0
      %350 = vmatprep.subr.bf16.mxu0 0
      %351 = vmatpush2.bf16.msra.mxu0 0
      %352 = vmatprep.subr.bf16.mxu0 0
      %353 = vmatpush2.bf16.msra.mxu0 0
      %354 = vmatprep.subr.bf16.mxu0 0
      %355 = vmatpush2.bf16.msra.mxu0 0
      %356 = vmatprep.subr.bf16.mxu0 0
      %357 = vmatpush2.bf16.msra.mxu0 0
      %358 = vmatprep.subr.bf16.mxu0 0
      %359 = vmatpush2.bf16.msra.mxu0 0
      %360 = vmatprep.mubr.bf16.mxu0 0
      %361 = vmatmul.mubr.bf16.gmra.mxu0 %v313
      %v362 = vpop.f32.mrf.mxu0
      %v363 = vadd.f32 %v276, %v362
      %v364 = vpop.f32.mrf.mxu0
      %v365 = vpop.f32.mrf.mxu0
      %v366 = vadd.f32 %v281, %v365
      %v367 = vpop.f32.mrf.mxu0
      %368 = vmatprep.mubr.bf16.mxu0 0
      %369 = vmatmul.mubr.bf16.gmra.mxu0 %v316
      %v370 = vpop.f32.mrf.mxu0
      %v371 = vadd.f32 %v286, %v370
      %v372 = vpop.f32.mrf.mxu0
      %v373 = vpop.f32.mrf.mxu0
      %v374 = vadd.f32 %v291, %v373
      %v375 = vpop.f32.mrf.mxu0
      %376 = vmatprep.mubr.bf16.mxu0 0
      %377 = vmatmul.mubr.bf16.gmra.mxu0 %v319
      %v378 = vpop.f32.mrf.mxu0
      %v379 = vadd.f32 %v296, %v378
      %v380 = vpop.f32.mrf.mxu0
      %v381 = vpop.f32.mrf.mxu0
      %v382 = vpop.f32.mrf.mxu0
      %383 = vdwg.mxu0
      %v384 = vpack.c.bf16 %v366, %v363
      %v385 = vpack.c.bf16 %v374, %v371
      %v386 = vpack.c.bf16 %v379, %v379
      %v390 = vunpack.c.l.b16 %v384
      %v391 = vunpack.c.h.b16 %v384
      %v392 = vunpack.c.l.b16 %v385
      %v393 = vunpack.c.h.b16 %v385
      %v394 = vunpack.c.l.b16 %v386
      %v395 = vpack.c.b16 %v390, %v390
      %v396 = vpack.c.b16 %v391, %v391
      %v397 = vpack.c.b16 %v392, %v392
      %v398 = vpack.c.b16 %v393, %v393
      %v399 = vpack.c.b16 %v394, %v394
      %vm405 = vcmask 519168
      %406 = vst.msk [vmem:[%s259] sm:$0xf] %vm405, %v395
      %407 = vst.msk [vmem:[%s259 + $0x4] sm:$0xf] %vm405, %v396
      %408 = vst.msk [vmem:[%s259 + $0x8] sm:$0xf] %vm405, %v397
      %409 = vst.msk [vmem:[%s259 + $0xc] sm:$0xf] %vm405, %v398
      %vm410 = vcmask 517120
      %411 = vst.msk [vmem:[%s259 + $0x10] sm:$0x3] %vm410, %v399
      %s412 = smul.u32 5, %s21
      %p413 = scmp.lt.s32.totalorder %s19, 3
      %s414 = scalar_select %p413, %s19, 3
      %p415 = scmp.lt.s32.totalorder %s412, 4
      %s416 = scalar_select %p415, %s412, 4
      %p417 = scmp.lt.s32.totalorder %s20, 0
      %s418 = scalar_select %p417, %s20, 0
      %s419 = sadd.s32 %s418, %s416
      %s420 = smul.addr %s414, 5
      %s421 = sadd.s32 %s419, %s420
      %s422 = smul.addr %s421, 4
      %s423 = scalar_lea.vmem %s3, %s422
      // Predicated region
      $region33: #{tpu_custom_call.1} parent=31 // pred_check
        %p424 = pneg %p135
      $region34: #{tpu_custom_call.1} parent=31 // pred_check_branch
        %426 = sbr.rel (%p424) target = $region36
      $region35: #{tpu_custom_call.1} parent=31 // pred_region
        %s427 = smul.u32 5, %s21
      $region36: #{tpu_custom_call.1} parent=31 // pred_fallthru
        _
    $region32: #{tpu_custom_call.1} parent=5 // pred_fallthru
      _
    %p428 = scmp.le.s32.totalorder 2, %s9
    // Predicated region
    $region37: #{tpu_custom_call.1} parent=5 // pred_check
      %p429 = pneg %p428
    $region38: #{tpu_custom_call.1} parent=5 // pred_check_branch
      %431 = sbr.rel (%p429) target = $region40
    $region39: #{tpu_custom_call.1} parent=5 // pred_region
      %s432 = ssub.s32 %s9, 2
      // Predicated region
      $region41: #{tpu_custom_call.1} parent=39 // pred_check
        %p433 = pneg %p141
      $region42: #{tpu_custom_call.1} parent=39 // pred_check_branch
        %435 = sbr.rel (%p433) target = $region44
      $region43: #{tpu_custom_call.1} parent=39 // pred_region
        %s436 = smul.u32 5, %s24
        %p437 = scmp.lt.s32.totalorder %s22, 3
        %s438 = scalar_select %p437, %s22, 3
        %p439 = scmp.lt.s32.totalorder %s436, 4
        %s440 = scalar_select %p439, %s436, 4
        %p441 = scmp.lt.s32.totalorder %s23, 0
        %s442 = scalar_select %p441, %s23, 0
        %s443 = sadd.s32 %s442, %s440
        %s444 = smul.addr %s438, 5
        %s445 = sadd.s32 %s443, %s444
        %s446 = smul.addr %s445, 4
        %s447 = scalar_lea.vmem %s3, %s446
      $region44: #{tpu_custom_call.1} parent=39 // pred_fallthru
        _
    $region40: #{tpu_custom_call.1} parent=5 // pred_fallthru
      _
  $region6: #{tpu_custom_call.1} parent=0 // loop_footer
    %s13 = sadd.s32 1, %s9
  $region7: #{tpu_custom_call.1} parent=0 // loop_footer_branch
    %8 = sbr.rel target = $region3
  $region8: #{tpu_custom_call.1} parent=0 // loop_exit
    _

</llo_original>
